<compile_context>
chip_gen: v6e
topology: v6e:2x2x1
jax: 0.10.0
libtpu: 0.0.40
codegen_flags: <defaults>
</compile_context>

<pallas_src>
import functools

import jax
import jax.numpy as jnp
from jax.experimental import pallas as pl
from jax.experimental.pallas import tpu as pltpu


def _vmem_capacity_bytes():
    """Best-effort per-core VMEM capacity; conservative 64 MiB fallback (v7x)."""
    try:
        return int(pltpu.get_tpu_info().vmem_capacity_bytes)
    except Exception:
        return 64 * 1024 * 1024


def _choose_tc(C):
    """Channel-block size: full C up to 512, else the largest nice divisor."""
    if C <= 512:
        return C
    for tc in (512, 256, 128):
        if C % tc == 0:
            return tc
    return C


def _channel_attention_kernel(x_ref, w1t_ref, w2t_ref, o_ref,
                              sum_ref, max_ref, havg_ref, hmax_ref, *,
                              hw, inv_hw, mask_tail):
    c = pl.program_id(1)
    s = pl.program_id(2)
    last_c = pl.num_programs(1) - 1
    last_s = pl.num_programs(2) - 1

    # New batch block: zero the pre-ReLU hidden accumulators.
    @pl.when((c == 0) & (s == 0))
    def _init_hidden():
        havg_ref[...] = jnp.zeros_like(havg_ref)
        hmax_ref[...] = jnp.zeros_like(hmax_ref)

    # New channel block: reset the running spatial sum / max.
    @pl.when(s == 0)
    def _init_pool():
        sum_ref[...] = jnp.zeros_like(sum_ref)
        max_ref[...] = jnp.full_like(max_ref, -jnp.inf)

    def _accumulate(x_for_sum, x_for_max):
        sum_ref[...] += jnp.sum(x_for_sum, axis=-1, dtype=jnp.float32)
        max_ref[...] = jnp.maximum(
            max_ref[...], jnp.max(x_for_max, axis=-1).astype(jnp.float32))

    if mask_tail:
        # Only the LAST spatial tile is partial; keep the plain (cheap) path
        # on every other tile (perf review: masking out of the hot loop).
        @pl.when(s != last_s)
        def _acc_plain():
            x = x_ref[...]
            _accumulate(x, x)

        @pl.when(s == last_s)
        def _acc_masked():
            x = x_ref[...]
            thw = x.shape[-1]
            lane = jax.lax.broadcasted_iota(jnp.int32, x.shape, 2)
            valid = (s * thw + lane) < hw
            _accumulate(jnp.where(valid, x, jnp.zeros_like(x)),
                        jnp.where(valid, x, jnp.full_like(x, -jnp.inf)))
    else:
        x = x_ref[...]
        _accumulate(x, x)

    # Channel block finished its spatial sweep: fold its pooled slice into the
    # pre-ReLU hidden accumulators via the narrow W1-slice matmul.  Weights
    # stay in their native dtype (no f32 copies of W1/W2).
    @pl.when(s == last_s)
    def _partial_fc():
        w1 = w1t_ref[...]                                  # [tc, Cr]
        wdt = w1.dtype
        avg_p = (sum_ref[...] * inv_hw).astype(wdt)        # divide by true HW
        max_p = max_ref[...].astype(wdt)
        havg_ref[...] += jnp.dot(avg_p, w1, preferred_element_type=jnp.float32)
        hmax_ref[...] += jnp.dot(max_p, w1, preferred_element_type=jnp.float32)

    # Last channel block, last spatial tile: ReLU, shared (wide) second
    # matmul, sigmoid, lane-dense [bn, C] store.
    @pl.when((c == last_c) & (s == last_s))
    def _finalize():
        w2 = w2t_ref[...]                                  # [Cr, C]
        h = (jnp.maximum(havg_ref[...], 0.0)
             + jnp.maximum(hmax_ref[...], 0.0)).astype(w2.dtype)
        out = jnp.dot(h, w2, preferred_element_type=jnp.float32)
        o_ref[...] = jax.nn.sigmoid(out).astype(o_ref.dtype)


def channel_attention(x, w1, w2, *, max_x_tile_bytes=None):
    """CBAM ChannelAttention forward.

    x:  [N, C, H, W] (NCHW, float32/bfloat16/float16)
    w1: [Cr, C, 1, 1]   (Conv2d(C, C//ratio, 1, bias=False).weight)
    w2: [C, Cr, 1, 1]   (Conv2d(C//ratio, C, 1, bias=False).weight)
    Returns the sigmoid channel-attention map of shape [N, C, 1, 1].
    """
    N, C, H, W = x.shape
    Cr = w1.shape[0]
    HW = H * W

    # Max-pool tail masking / init uses -inf: require a float dtype with inf.
    if (not jnp.issubdtype(x.dtype, jnp.floating)
            or jnp.dtype(x.dtype).itemsize < 2):
        raise NotImplementedError(
            "channel_attention supports float32/bfloat16/float16 inputs only.")

    itemsize = jnp.dtype(x.dtype).itemsize
    w_itemsize = jnp.dtype(w1.dtype).itemsize

    w1t = w1.reshape(Cr, C).T                              # [C, Cr] (tiny)
    w2t = w2.reshape(C, Cr).T                              # [Cr, C] (tiny)

    # Batch block: multiple of 8 (or full N) so the (bn, C) output block
    # satisfies the (8, 128) rule; bn=8 gives >=2 parallel programs for N>=16.
    bn = 8 if N % 8 == 0 else N

    tc = _choose_tc(C)
    c_steps = C // tc

    # Generation-aware per-x-buffer budget (double-buffered by the pipeline).
    vmem_cap = _vmem_capacity_bytes()
    x_budget = min(16 << 20, max(4 << 20, vmem_cap // 12))
    if max_x_tile_bytes is not None:
        x_budget = int(max_x_tile_bytes)

    if HW <= 128 or bn * tc * HW * itemsize <= x_budget:
        thw = HW                                           # single full-HW block
    else:
        thw = (x_budget // (bn * tc * itemsize)) // 128 * 128
        thw = max(128, min(thw, (HW // 128) * 128))
    s_steps = pl.cdiv(HW, thw)
    mask_tail = (HW % thw) != 0

    # Scoped-VMEM limit from the actual footprint (+margin), capped below the
    # physical per-core capacity (64 MiB on v7x).
    footprint = (2 * bn * tc * thw * itemsize              # x (double-buffered)
                 + 2 * tc * Cr * w_itemsize                # W1 slice
                 + 2 * Cr * C * w_itemsize                 # W2
                 + 2 * bn * C * itemsize                   # output block
                 + 4 * (2 * bn * tc + 2 * bn * Cr))        # f32 scratch
    vmem_limit = max(2 * footprint, 32 << 20)
    vmem_limit = int(min(vmem_limit,
                         max(vmem_cap - (8 << 20), footprint + (4 << 20))))

    flops = 2 * N * C * HW + 6 * N * C * Cr
    bytes_accessed = (N * C * HW + N * C) * itemsize + 2 * C * Cr * w_itemsize
    cost = pl.CostEstimate(flops=flops, transcendentals=N * C,
                           bytes_accessed=bytes_accessed)

    x_in = x.reshape(N, C, HW)                             # free reshape (NCHW)
    kernel = functools.partial(_channel_attention_kernel,
                               hw=HW, inv_hw=1.0 / HW, mask_tail=mask_tail)

    out = pl.pallas_call(
        kernel,
        out_shape=jax.ShapeDtypeStruct((N, C), x.dtype),
        grid_spec=pltpu.PrefetchScalarGridSpec(
            num_scalar_prefetch=0,
            grid=(N // bn, c_steps, s_steps),
            in_specs=[
                pl.BlockSpec((bn, tc, thw), lambda b, c, s: (b, c, s)),
                pl.BlockSpec((tc, Cr), lambda b, c, s: (c, 0)),
                pl.BlockSpec((Cr, C), lambda b, c, s: (0, 0)),
            ],
            out_specs=pl.BlockSpec((bn, C), lambda b, c, s: (b, 0)),
            scratch_shapes=[
                pltpu.VMEM((bn, tc), jnp.float32),   # running spatial sum
                pltpu.VMEM((bn, tc), jnp.float32),   # running spatial max
                pltpu.VMEM((bn, Cr), jnp.float32),   # accumulated avg @ W1 (pre-ReLU)
                pltpu.VMEM((bn, Cr), jnp.float32),   # accumulated max @ W1 (pre-ReLU)
            ],
        ),
        compiler_params=pltpu.CompilerParams(
            dimension_semantics=("parallel", "arbitrary", "arbitrary"),
            vmem_limit_bytes=vmem_limit,
        ),
        cost_estimate=cost,
    )(x_in, w1t, w2t)
    return out.reshape(N, C, 1, 1)


def _reference(x, w1, w2):
    """Pure-JAX reference mirroring the PyTorch module."""
    N, C, H, W = x.shape
    Cr = w1.shape[0]
    avg_p = jnp.mean(x, axis=(2, 3))                       # [N, C]
    max_p = jnp.max(x, axis=(2, 3))                        # [N, C]
    w1m = w1.reshape(Cr, C)
    w2m = w2.reshape(C, Cr)

    def fc(p):
        return jnp.maximum(p @ w1m.T, 0.0) @ w2m.T

    return jax.nn.sigmoid(fc(avg_p) + fc(max_p)).reshape(N, C, 1, 1)


def _run_case(key, N, C, H, W, ratio, max_x_tile_bytes=None):
    Cr = max(C // ratio, 1)
    kx, k1, k2 = jax.random.split(key, 3)
    x = jax.random.normal(kx, (N, C, H, W), dtype=jnp.float32)
    w1 = jax.random.normal(k1, (Cr, C, 1, 1), dtype=jnp.float32) * 0.1
    w2 = jax.random.normal(k2, (C, Cr, 1, 1), dtype=jnp.float32) * 0.1

    out = jax.block_until_ready(
        channel_attention(x, w1, w2, max_x_tile_bytes=max_x_tile_bytes))
    ref = _reference(x, w1, w2)
    assert out.shape == (N, C, 1, 1)
    err = float(jnp.max(jnp.abs(out - ref)))
    assert jnp.allclose(out, ref, atol=2e-5, rtol=2e-5), \
        f"mismatch vs reference: N={N} C={C} H={H} W={W} max_abs_err={err}"


if __name__ == "__main__":
    key = jax.random.PRNGKey(0)
    keys = jax.random.split(key, 5)
    # 1) Single full-HW block, single channel block.
    _run_case(keys[0], N=2, C=32, H=16, W=16, ratio=16)
    # 2) Streaming spatial axis with a masked tail tile (forced small budget).
    _run_case(keys[1], N=2, C=32, H=20, W=20, ratio=16,
              max_x_tile_bytes=64 * 1024)
    # 3) HW < 128 (late CBAM stage style): full-HW lane block, no host transpose.
    _run_case(keys[2], N=2, C=128, H=7, W=7, ratio=16)
    # 4) Channel tiling (C > 512) + streamed spatial axis, no tail masking.
    _run_case(keys[3], N=2, C=1024, H=16, W=16, ratio=16,
              max_x_tile_bytes=512 * 1024)
    # 5) bn=8 batch blocks -> two megacore-parallel programs.
    _run_case(keys[4], N=16, C=64, H=8, W=8, ratio=16)
    print("KERNEL_OK")
</pallas_src>

<mosaic_0001>
module attributes {stable_mosaic.version = 11 : i64} {
  func.func @_channel_attention_kernel(%arg0: i32, %arg1: i32, %arg2: i32, %arg3: memref<2x32x256xf32, #tpu.memory_space<vmem>>, %arg4: memref<32x2xf32, #tpu.memory_space<vmem>>, %arg5: memref<2x32xf32, #tpu.memory_space<vmem>>, %arg6: memref<2x32xf32, #tpu.memory_space<vmem>>, %arg7: memref<2x32xf32, #tpu.memory_space<vmem>>, %arg8: memref<2x32xf32, #tpu.memory_space<vmem>>, %arg9: memref<2x2xf32, #tpu.memory_space<vmem>>, %arg10: memref<2x2xf32, #tpu.memory_space<vmem>>) attributes {dimension_semantics = [#tpu.dimension_semantics<parallel>, #tpu.dimension_semantics<arbitrary>, #tpu.dimension_semantics<arbitrary>], iteration_bounds = array<i64: 1, 1, 1>, scalar_prefetch = 0 : i64, scratch_operands = 4 : i64, tpu.core_type = #tpu.core_type<tc>, window_params = [{transform_indices = @transform_0, window_bounds = array<i64: 2, 32, 256>}, {transform_indices = @transform_1, window_bounds = array<i64: 32, 2>}, {pipeline_mode = #tpu.pipeline_mode<synchronous>, transform_indices = @transform_2, window_bounds = array<i64: 2, 32>}, {transform_indices = @transform_3, window_bounds = array<i64: 2, 32>}]} {
    %c0_i32 = arith.constant 0 : i32
    %0 = arith.cmpi eq, %arg1, %c0_i32 : i32
    %c0_i32_0 = arith.constant 0 : i32
    %1 = arith.cmpi eq, %arg2, %c0_i32_0 : i32
    %2 = arith.andi %0, %1 : i1
    %3 = arith.extui %2 : i1 to i32
    %c0_i32_1 = arith.constant 0 : i32
    %4 = arith.cmpi ne, %3, %c0_i32_1 : i32
    scf.if %4 {
      %cst_20 = arith.constant 0.000000e+00 : f32
      %25 = vector.broadcast %cst_20 : f32 to vector<2x2xf32>
      %c0_21 = arith.constant 0 : index
      %c0_22 = arith.constant 0 : index
      %26 = vector.load %arg9[%c0_21, %c0_22] : memref<2x2xf32, #tpu.memory_space<vmem>>, vector<2x2xf32>
      tpu.vector_store %arg9[%c0_21, %c0_22], %25 {strides = array<i32>} : memref<2x2xf32, #tpu.memory_space<vmem>>, vector<2x2xf32>,
      %cst_23 = arith.constant 0.000000e+00 : f32
      %27 = vector.broadcast %cst_23 : f32 to vector<2x2xf32>
      %c0_24 = arith.constant 0 : index
      %c0_25 = arith.constant 0 : index
      %28 = vector.load %arg10[%c0_24, %c0_25] : memref<2x2xf32, #tpu.memory_space<vmem>>, vector<2x2xf32>
      tpu.vector_store %arg10[%c0_24, %c0_25], %27 {strides = array<i32>} : memref<2x2xf32, #tpu.memory_space<vmem>>, vector<2x2xf32>,
    } else {
    }
    %c0_i32_2 = arith.constant 0 : i32
    %5 = arith.cmpi eq, %arg2, %c0_i32_2 : i32
    %6 = arith.extui %5 : i1 to i32
    %c0_i32_3 = arith.constant 0 : i32
    %7 = arith.cmpi ne, %6, %c0_i32_3 : i32
    scf.if %7 {
      %cst_20 = arith.constant 0.000000e+00 : f32
      %25 = vector.broadcast %cst_20 : f32 to vector<2x32xf32>
      %c0_21 = arith.constant 0 : index
      %c0_22 = arith.constant 0 : index
      %26 = vector.load %arg7[%c0_21, %c0_22] : memref<2x32xf32, #tpu.memory_space<vmem>>, vector<2x32xf32>
      tpu.vector_store %arg7[%c0_21, %c0_22], %25 {strides = array<i32>} : memref<2x32xf32, #tpu.memory_space<vmem>>, vector<2x32xf32>,
      %cst_23 = arith.constant 0xFF800000 : f32
      %27 = vector.broadcast %cst_23 : f32 to vector<2x32xf32>
      %c0_24 = arith.constant 0 : index
      %c0_25 = arith.constant 0 : index
      %28 = vector.load %arg8[%c0_24, %c0_25] : memref<2x32xf32, #tpu.memory_space<vmem>>, vector<2x32xf32>
      tpu.vector_store %arg8[%c0_24, %c0_25], %27 {strides = array<i32>} : memref<2x32xf32, #tpu.memory_space<vmem>>, vector<2x32xf32>,
    } else {
    }
    %c0 = arith.constant 0 : index
    %c0_4 = arith.constant 0 : index
    %c0_5 = arith.constant 0 : index
    %8 = vector.load %arg3[%c0, %c0_4, %c0_5] : memref<2x32x256xf32, #tpu.memory_space<vmem>>, vector<2x32x256xf32>
    %c0_6 = arith.constant 0 : index
    %c0_7 = arith.constant 0 : index
    %9 = vector.load %arg7[%c0_6, %c0_7] : memref<2x32xf32, #tpu.memory_space<vmem>>, vector<2x32xf32>
    %cst = arith.constant dense<0.000000e+00> : vector<2x32xf32>
    %10 = vector.multi_reduction <add>, %8, %cst [2] : vector<2x32x256xf32> to vector<2x32xf32>
    %11 = arith.addf %9, %10 : vector<2x32xf32>
    %c0_8 = arith.constant 0 : index
    %c0_9 = arith.constant 0 : index
    %12 = vector.load %arg7[%c0_8, %c0_9] : memref<2x32xf32, #tpu.memory_space<vmem>>, vector<2x32xf32>
    tpu.vector_store %arg7[%c0_8, %c0_9], %11 {strides = array<i32>} : memref<2x32xf32, #tpu.memory_space<vmem>>, vector<2x32xf32>,
    %c0_10 = arith.constant 0 : index
    %c0_11 = arith.constant 0 : index
    %13 = vector.load %arg8[%c0_10, %c0_11] : memref<2x32xf32, #tpu.memory_space<vmem>>, vector<2x32xf32>
    %cst_12 = arith.constant dense<0xFF800000> : vector<2x32xf32>
    %14 = vector.multi_reduction <maximumf>, %8, %cst_12 [2] : vector<2x32x256xf32> to vector<2x32xf32>
    %15 = arith.maximumf %13, %14 : vector<2x32xf32>
    %c0_13 = arith.constant 0 : index
    %c0_14 = arith.constant 0 : index
    %16 = vector.load %arg8[%c0_13, %c0_14] : memref<2x32xf32, #tpu.memory_space<vmem>>, vector<2x32xf32>
    tpu.vector_store %arg8[%c0_13, %c0_14], %15 {strides = array<i32>} : memref<2x32xf32, #tpu.memory_space<vmem>>, vector<2x32xf32>,
    %c0_i32_15 = arith.constant 0 : i32
    %17 = arith.cmpi eq, %arg2, %c0_i32_15 : i32
    %18 = arith.extui %17 : i1 to i32
    %c0_i32_16 = arith.constant 0 : i32
    %19 = arith.cmpi ne, %18, %c0_i32_16 : i32
    scf.if %19 {
      %c0_20 = arith.constant 0 : index
      %c0_21 = arith.constant 0 : index
      %25 = vector.load %arg4[%c0_20, %c0_21] : memref<32x2xf32, #tpu.memory_space<vmem>>, vector<32x2xf32>
      %c0_22 = arith.constant 0 : index
      %c0_23 = arith.constant 0 : index
      %26 = vector.load %arg7[%c0_22, %c0_23] : memref<2x32xf32, #tpu.memory_space<vmem>>, vector<2x32xf32>
      %cst_24 = arith.constant 3.906250e-03 : f32
      %27 = vector.broadcast %cst_24 : f32 to vector<2x32xf32>
      %28 = arith.mulf %26, %27 : vector<2x32xf32>
      %c0_25 = arith.constant 0 : index
      %c0_26 = arith.constant 0 : index
      %29 = vector.load %arg8[%c0_25, %c0_26] : memref<2x32xf32, #tpu.memory_space<vmem>>, vector<2x32xf32>
      %c0_27 = arith.constant 0 : index
      %c0_28 = arith.constant 0 : index
      %30 = vector.load %arg9[%c0_27, %c0_28] : memref<2x2xf32, #tpu.memory_space<vmem>>, vector<2x2xf32>
      %cst_29 = arith.constant dense<0.000000e+00> : vector<2x2xf32>
      %31 = tpu.matmul %28, %25, %cst_29 {dimension_numbers = #tpu.dot_dimension_numbers<[1], [0], [0], [1], [0, 0, 1, 1], [], []>} : vector<2x32xf32>, vector<32x2xf32>, vector<2x2xf32> -> vector<2x2xf32>
      %32 = arith.addf %30, %31 : vector<2x2xf32>
      %c0_30 = arith.constant 0 : index
      %c0_31 = arith.constant 0 : index
      %33 = vector.load %arg9[%c0_30, %c0_31] : memref<2x2xf32, #tpu.memory_space<vmem>>, vector<2x2xf32>
      tpu.vector_store %arg9[%c0_30, %c0_31], %32 {strides = array<i32>} : memref<2x2xf32, #tpu.memory_space<vmem>>, vector<2x2xf32>,
      %c0_32 = arith.constant 0 : index
      %c0_33 = arith.constant 0 : index
      %34 = vector.load %arg10[%c0_32, %c0_33] : memref<2x2xf32, #tpu.memory_space<vmem>>, vector<2x2xf32>
      %cst_34 = arith.constant dense<0.000000e+00> : vector<2x2xf32>
      %35 = tpu.matmul %29, %25, %cst_34 {dimension_numbers = #tpu.dot_dimension_numbers<[1], [0], [0], [1], [0, 0, 1, 1], [], []>} : vector<2x32xf32>, vector<32x2xf32>, vector<2x2xf32> -> vector<2x2xf32>
      %36 = arith.addf %34, %35 : vector<2x2xf32>
      %c0_35 = arith.constant 0 : index
      %c0_36 = arith.constant 0 : index
      %37 = vector.load %arg10[%c0_35, %c0_36] : memref<2x2xf32, #tpu.memory_space<vmem>>, vector<2x2xf32>
      tpu.vector_store %arg10[%c0_35, %c0_36], %36 {strides = array<i32>} : memref<2x2xf32, #tpu.memory_space<vmem>>, vector<2x2xf32>,
    } else {
    }
    %c0_i32_17 = arith.constant 0 : i32
    %20 = arith.cmpi eq, %arg1, %c0_i32_17 : i32
    %c0_i32_18 = arith.constant 0 : i32
    %21 = arith.cmpi eq, %arg2, %c0_i32_18 : i32
    %22 = arith.andi %20, %21 : i1
    %23 = arith.extui %22 : i1 to i32
    %c0_i32_19 = arith.constant 0 : i32
    %24 = arith.cmpi ne, %23, %c0_i32_19 : i32
    scf.if %24 {
      %c0_20 = arith.constant 0 : index
      %c0_21 = arith.constant 0 : index
      %25 = vector.load %arg5[%c0_20, %c0_21] : memref<2x32xf32, #tpu.memory_space<vmem>>, vector<2x32xf32>
      %c0_22 = arith.constant 0 : index
      %c0_23 = arith.constant 0 : index
      %26 = vector.load %arg9[%c0_22, %c0_23] : memref<2x2xf32, #tpu.memory_space<vmem>>, vector<2x2xf32>
      %cst_24 = arith.constant 0.000000e+00 : f32
      %27 = vector.broadcast %cst_24 : f32 to vector<2x2xf32>
      %28 = arith.maximumf %26, %27 : vector<2x2xf32>
      %c0_25 = arith.constant 0 : index
      %c0_26 = arith.constant 0 : index
      %29 = vector.load %arg10[%c0_25, %c0_26] : memref<2x2xf32, #tpu.memory_space<vmem>>, vector<2x2xf32>
      %cst_27 = arith.constant 0.000000e+00 : f32
      %30 = vector.broadcast %cst_27 : f32 to vector<2x2xf32>
      %31 = arith.maximumf %29, %30 : vector<2x2xf32>
      %32 = arith.addf %28, %31 : vector<2x2xf32>
      %cst_28 = arith.constant dense<0.000000e+00> : vector<2x32xf32>
      %33 = tpu.matmul %32, %25, %cst_28 {dimension_numbers = #tpu.dot_dimension_numbers<[1], [0], [0], [1], [0, 0, 1, 1], [], []>} : vector<2x2xf32>, vector<2x32xf32>, vector<2x32xf32> -> vector<2x32xf32>
      %34 = arith.negf %33 : vector<2x32xf32>
      %35 = math.exp %34 : vector<2x32xf32>
      %cst_29 = arith.constant 1.000000e+00 : f32
      %36 = vector.broadcast %cst_29 : f32 to vector<2x32xf32>
      %37 = arith.addf %36, %35 : vector<2x32xf32>
      %38 = arith.divf %36, %37 : vector<2x32xf32>
      %c0_30 = arith.constant 0 : index
      %c0_31 = arith.constant 0 : index
      %39 = vector.load %arg6[%c0_30, %c0_31] : memref<2x32xf32, #tpu.memory_space<vmem>>, vector<2x32xf32>
      tpu.vector_store %arg6[%c0_30, %c0_31], %38 {strides = array<i32>} : memref<2x32xf32, #tpu.memory_space<vmem>>, vector<2x32xf32>,
    } else {
    }
    return
  }
  func.func @transform_0(%arg0: i32, %arg1: i32, %arg2: i32) -> (i32, i32, i32) {
    %c0_i32 = arith.constant 0 : i32
    return %arg0, %arg1, %arg2 : i32, i32, i32
  }
  func.func @transform_1(%arg0: i32, %arg1: i32, %arg2: i32) -> (i32, i32) {
    %c0_i32 = arith.constant 0 : i32
    %c0_i32_0 = arith.constant 0 : i32
    return %arg1, %c0_i32 : i32, i32
  }
  func.func @transform_2(%arg0: i32, %arg1: i32, %arg2: i32) -> (i32, i32) {
    %c0_i32 = arith.constant 0 : i32
    %c0_i32_0 = arith.constant 0 : i32
    %c0_i32_1 = arith.constant 0 : i32
    return %c0_i32, %c0_i32_0 : i32, i32
  }
  func.func @transform_3(%arg0: i32, %arg1: i32, %arg2: i32) -> (i32, i32) {
    %c0_i32 = arith.constant 0 : i32
    %c0_i32_0 = arith.constant 0 : i32
    return %arg0, %c0_i32 : i32, i32
  }
}

</mosaic_0001>

<llo_original>
// kernel: tpu_custom_call.1
$region0: #{tpu_custom_call.1}
  #allocation0 [shape = 'u32[]', space=smem, size = 0x4, offset = 0x4, fixed_abs, tag = 'smem constant byte address 0x4 - core index']
  #allocation1 [shape = 'u32[144,128]{1,0:T(1,128)}', space=vmem, size = 0x12000, scoped, tag = 'internal scratch']
  #allocation2 [shape = 'f32[2,32]{1,0:T(2,128)}', space=vmem, size = 0x400, scoped, tag = 'scratch operand']
  #allocation3 [shape = 'f32[2,32]{1,0:T(2,128)}', space=vmem, size = 0x400, scoped, tag = 'scratch operand']
  #allocation4 [shape = 'f32[2,2]{1,0:T(2,128)}', space=vmem, size = 0x400, scoped, tag = 'scratch operand']
  #allocation5 [shape = 'f32[2,2]{1,0:T(2,128)}', space=vmem, size = 0x400, scoped, tag = 'scratch operand']
  %s0 = inlined_call_operand.hbm [shape: f32[2,32,256], index: 0, kind: input, shape index: {}]
  %s1 = inlined_call_operand.vmem [shape: f32[32,2], index: 1, kind: input, shape index: {}]
  %s2 = inlined_call_operand.vmem [shape: f32[2,32], index: 2, kind: input, shape index: {}]
  %s3 = inlined_call_operand.hbm [shape: f32[2,32], index: 3, kind: output, shape index: {}]
  %s4 = sld [smem:[#allocation0]]
  $region42: #{tpu_custom_call.1} parent=0
    _
  %s6 = ssub.s32 1, %s4
  %s7 = scalar_select 0, %s6, %s4
  $region1: #{tpu_custom_call.1} parent=0
    #allocation6 [shape = 'u8[65536]{0}', space=vmem, size = 0x10000, scoped, tag = 'input window, operand 0, single buffered']
    #allocation7 [shape = 's32[1]{0}', space=sflag, size = 0x4, scoped, tag = 'scoped memory for tpu_custom_call.1']
    #allocation8 [shape = 's32[1]{0}', space=sflag, size = 0x4, scoped, tag = 'scoped memory for tpu_custom_call.1']
    #allocation9 [shape = 'u8[1024]{0}', space=vmem, size = 0x400, scoped, tag = 'output window, operand 0, single buffered']
    %8 = vsyncpa [#allocation7], 0
    %9 = vsyncpa [#allocation8], 0
    // Predicated region
    $region2: #{tpu_custom_call.1} parent=1 // pred_check
      _
    $region3: #{tpu_custom_call.1} parent=1 // pred_check_branch
      %11 = sbr.rel (0) target = $region5
    $region4: #{tpu_custom_call.1} parent=1 // pred_region
      %s13 = ssub.s32 2048, 2048
      %14 = vsyncadd [#allocation7], %s13
      %s15 = sshll.u32 [#allocation6], 4
      %s16 = int_to_ptr.vmem [resolvable:$true] %s15
      %21 = dma.hbm_to_vmem [thread:$0]  %s0, 2048, %s16, [#allocation7], 256, 256, 16
    $region5: #{tpu_custom_call.1} parent=1 // pred_fallthru
      _
    // Predicated region
    $region6: #{tpu_custom_call.1} parent=1 // pred_check
      _
    $region7: #{tpu_custom_call.1} parent=1 // pred_check_branch
      %23 = sbr.rel (0) target = $region9
    $region8: #{tpu_custom_call.1} parent=1 // pred_region
      _
    $region9: #{tpu_custom_call.1} parent=1 // pred_fallthru
      _
    // Predicated region
    $region10: #{tpu_custom_call.1} parent=1 // pred_check
      _
    $region11: #{tpu_custom_call.1} parent=1 // pred_check_branch
      %25 = sbr.rel (0) target = $region13
    $region12: #{tpu_custom_call.1} parent=1 // pred_region
      _
    $region13: #{tpu_custom_call.1} parent=1 // pred_fallthru
      _
    // Predicated region
    $region14: #{tpu_custom_call.1} parent=1 // pred_check
      _
    $region15: #{tpu_custom_call.1} parent=1 // pred_check_branch
      %27 = sbr.rel (0) target = $region17
    $region16: #{tpu_custom_call.1} parent=1 // pred_region
      %28 = dma.done [#allocation7], 2048
    $region17: #{tpu_custom_call.1} parent=1 // pred_fallthru
      _
    %p29 = scmp.eq.s32.totalorder 0, 0
    %p30 = scmp.eq.s32.totalorder 0, 0
    %p31 = pnand %p29, %p30
    %p32 = pneg %p31
    // Predicated region
    $region18: #{tpu_custom_call.1} parent=1 // pred_check
      _
    $region19: #{tpu_custom_call.1} parent=1 // pred_check_branch
      %34 = sbr.rel (%p31) target = $region21
    $region20: #{tpu_custom_call.1} parent=1 // pred_region
      %vm35 = vcmask 9216
      %36 = vst.msk [vmem:[#allocation4] sm:$0x3] %vm35, 0.0
      %37 = vst.msk [vmem:[#allocation5] sm:$0x3] %vm35, 0.0
    $region21: #{tpu_custom_call.1} parent=1 // pred_fallthru
      _
    // Predicated region
    $region22: #{tpu_custom_call.1} parent=1 // pred_check
      %p38 = pneg %p30
    $region23: #{tpu_custom_call.1} parent=1 // pred_check_branch
      %40 = sbr.rel (%p38) target = $region25
    $region24: #{tpu_custom_call.1} parent=1 // pred_region
      %vm41 = vcmask 254976
      %42 = vst.msk [vmem:[#allocation2] sm:$0x3] %vm41, 0.0
      %43 = vst.msk [vmem:[#allocation3] sm:$0x3] %vm41, -inf
    $region25: #{tpu_custom_call.1} parent=1 // pred_fallthru
      _
    %v44 = vld [vmem:[#allocation6] sm:$0xff]
    %v45 = vld [vmem:[#allocation6 + $0x8] sm:$0xff]
    %v46 = vld [vmem:[#allocation6 + $0x10] sm:$0xff]
    %v47 = vld [vmem:[#allocation6 + $0x18] sm:$0xff]
    %v48 = vld [vmem:[#allocation6 + $0x20] sm:$0xff]
    %v49 = vld [vmem:[#allocation6 + $0x28] sm:$0xff]
    %v50 = vld [vmem:[#allocation6 + $0x30] sm:$0xff]
    %v51 = vld [vmem:[#allocation6 + $0x38] sm:$0xff]
    %v52 = vld [vmem:[#allocation6 + $0x40] sm:$0xff]
    %v53 = vld [vmem:[#allocation6 + $0x48] sm:$0xff]
    %v54 = vld [vmem:[#allocation6 + $0x50] sm:$0xff]
    %v55 = vld [vmem:[#allocation6 + $0x58] sm:$0xff]
    %v56 = vld [vmem:[#allocation6 + $0x60] sm:$0xff]
    %v57 = vld [vmem:[#allocation6 + $0x68] sm:$0xff]
    %v58 = vld [vmem:[#allocation6 + $0x70] sm:$0xff]
    %v59 = vld [vmem:[#allocation6 + $0x78] sm:$0xff]
    %v60 = vld [vmem:[#allocation2] sm:$0x3]
    %v61 = vadd.f32 %v44, %v45
    %62 = vadd.xlane.f32.xlu0 %v61
    %v63 = vpop.xlane.xlu0 %62
    %v64 = vadd.f32 %v46, %v47
    %65 = vadd.xlane.f32.xlu0 %v64
    %v66 = vpop.xlane.xlu0 %65
    %v67 = vadd.f32 %v48, %v49
    %68 = vadd.xlane.f32.xlu0 %v67
    %v69 = vpop.xlane.xlu0 %68
    %v70 = vadd.f32 %v50, %v51
    %71 = vadd.xlane.f32.xlu0 %v70
    %v72 = vpop.xlane.xlu0 %71
    %v73 = vadd.f32 %v52, %v53
    %74 = vadd.xlane.f32.xlu0 %v73
    %v75 = vpop.xlane.xlu0 %74
    %v76 = vadd.f32 %v54, %v55
    %77 = vadd.xlane.f32.xlu0 %v76
    %v78 = vpop.xlane.xlu0 %77
    %v79 = vadd.f32 %v56, %v57
    %80 = vadd.xlane.f32.xlu0 %v79
    %v81 = vpop.xlane.xlu0 %80
    %v82 = vadd.f32 %v58, %v59
    %83 = vadd.xlane.f32.xlu0 %v82
    %v84 = vpop.xlane.xlu0 %83
    %v93 = vlaneseq
    %v94 = vand.u32 %v93, 127
    %v95 = vlaneseq
    %v96 = vshrl.u32 %v95, 7
    %v97 = vsub.s32 %v94, %v96
    %v98 = vrot.slane %v63, %v97
    %v99 = vadd.s32 %v94, 4294967288
    %v100 = vlaneseq
    %v101 = vshrl.u32 %v100, 7
    %v102 = vsub.s32 %v99, %v101
    %v103 = vrot.slane %v66, %v102
    %vm104 = vcmask 130112
    %v105 = vsel %vm104, %v103, %v98
    %v106 = vadd.s32 %v94, 4294967280
    %v107 = vlaneseq
    %v108 = vshrl.u32 %v107, 7
    %v109 = vsub.s32 %v106, %v108
    %v110 = vrot.slane %v69, %v109
    %vm111 = vcmask 195712
    %v112 = vsel %vm111, %v110, %v105
    %v113 = vadd.s32 %v94, 4294967272
    %v114 = vlaneseq
    %v115 = vshrl.u32 %v114, 7
    %v116 = vsub.s32 %v113, %v115
    %v117 = vrot.slane %v72, %v116
    %vm118 = vcmask 261312
    %v119 = vsel %vm118, %v117, %v112
    %v120 = vlaneseq
    %v121 = vshrl.u32 %v120, 7
    %v122 = vsub.s32 %v94, %v121
    %v123 = vrot.slane %v75, %v122
    %v124 = vlaneseq
    %v125 = vshrl.u32 %v124, 7
    %v126 = vsub.s32 %v99, %v125
    %v127 = vrot.slane %v78, %v126
    %v128 = vsel %vm104, %v127, %v123
    %v129 = vlaneseq
    %v130 = vshrl.u32 %v129, 7
    %v131 = vsub.s32 %v106, %v130
    %v132 = vrot.slane %v81, %v131
    %v133 = vsel %vm111, %v132, %v128
    %v134 = vlaneseq
    %v135 = vshrl.u32 %v134, 7
    %v136 = vsub.s32 %v113, %v135
    %v137 = vrot.slane %v84, %v136
    %v138 = vsel %vm118, %v137, %v133
    %vm139 = vcmask 1041409
    %v140 = vsel %vm139, %v138, %v119
    %v142 = vadd.f32 %v60, %v140
    %vm143 = vcmask 254976
    %144 = vst.msk [vmem:[#allocation2] sm:$0x3] %vm143, %v142
    %v145 = vld [vmem:[#allocation3] sm:$0x3]
    %v146 = vmax.f32 %v44, %v45
    %147 = vmax.xlane.f32.xlu0 %v146
    %v148 = vpop.xlane.xlu0 %147
    %v149 = vmax.f32 %v46, %v47
    %150 = vmax.xlane.f32.xlu0 %v149
    %v151 = vpop.xlane.xlu0 %150
    %v152 = vmax.f32 %v48, %v49
    %153 = vmax.xlane.f32.xlu0 %v152
    %v154 = vpop.xlane.xlu0 %153
    %v155 = vmax.f32 %v50, %v51
    %156 = vmax.xlane.f32.xlu0 %v155
    %v157 = vpop.xlane.xlu0 %156
    %v158 = vmax.f32 %v52, %v53
    %159 = vmax.xlane.f32.xlu0 %v158
    %v160 = vpop.xlane.xlu0 %159
    %v161 = vmax.f32 %v54, %v55
    %162 = vmax.xlane.f32.xlu0 %v161
    %v163 = vpop.xlane.xlu0 %162
    %v164 = vmax.f32 %v56, %v57
    %165 = vmax.xlane.f32.xlu0 %v164
    %v166 = vpop.xlane.xlu0 %165
    %v167 = vmax.f32 %v58, %v59
    %168 = vmax.xlane.f32.xlu0 %v167
    %v169 = vpop.xlane.xlu0 %168
    %v178 = vlaneseq
    %v179 = vshrl.u32 %v178, 7
    %v180 = vsub.s32 %v94, %v179
    %v181 = vrot.slane %v148, %v180
    %v182 = vlaneseq
    %v183 = vshrl.u32 %v182, 7
    %v184 = vsub.s32 %v99, %v183
    %v185 = vrot.slane %v151, %v184
    %v186 = vsel %vm104, %v185, %v181
    %v187 = vlaneseq
    %v188 = vshrl.u32 %v187, 7
    %v189 = vsub.s32 %v106, %v188
    %v190 = vrot.slane %v154, %v189
    %v191 = vsel %vm111, %v190, %v186
    %v192 = vlaneseq
    %v193 = vshrl.u32 %v192, 7
    %v194 = vsub.s32 %v113, %v193
    %v195 = vrot.slane %v157, %v194
    %v196 = vsel %vm118, %v195, %v191
    %v197 = vlaneseq
    %v198 = vshrl.u32 %v197, 7
    %v199 = vsub.s32 %v94, %v198
    %v200 = vrot.slane %v160, %v199
    %v201 = vlaneseq
    %v202 = vshrl.u32 %v201, 7
    %v203 = vsub.s32 %v99, %v202
    %v204 = vrot.slane %v163, %v203
    %v205 = vsel %vm104, %v204, %v200
    %v206 = vlaneseq
    %v207 = vshrl.u32 %v206, 7
    %v208 = vsub.s32 %v106, %v207
    %v209 = vrot.slane %v166, %v208
    %v210 = vsel %vm111, %v209, %v205
    %v211 = vlaneseq
    %v212 = vshrl.u32 %v211, 7
    %v213 = vsub.s32 %v113, %v212
    %v214 = vrot.slane %v169, %v213
    %v215 = vsel %vm118, %v214, %v210
    %v216 = vsel %vm139, %v215, %v196
    %v218 = vmax.f32 %v145, %v216
    %219 = vst.msk [vmem:[#allocation3] sm:$0x3] %vm143, %v218
    // Predicated region
    $region26: #{tpu_custom_call.1} parent=1 // pred_check
      %p220 = pneg %p30
    $region27: #{tpu_custom_call.1} parent=1 // pred_check_branch
      %222 = sbr.rel (%p220) target = $region29
    $region28: #{tpu_custom_call.1} parent=1 // pred_region
      %v223 = vld [vmem:[%s1] sm:$0xff]
      %v224 = vld [vmem:[%s1 + $0x8] sm:$0xff]
      %v225 = vld [vmem:[%s1 + $0x10] sm:$0xff]
      %v226 = vld [vmem:[%s1 + $0x18] sm:$0xff]
      %v227 = vld [vmem:[#allocation2] sm:$0x3]
      %v228 = vmul.f32 %v227, 0.00390625
      %v229 = vld [vmem:[#allocation3] sm:$0x3]
      %v230 = vld [vmem:[#allocation4] sm:$0x3]
      %vm231 = vcmask 261120
      %v233 = vsel %vm231, %v228, 0
      %235 = vmatprep.subr.mxu0 0.0
      %236 = vmatpush1.msra.mxu0 0.0
      %237 = vmatprep.subr.mxu0 0.0
      %238 = vmatpush1.msra.mxu0 0.0
      %239 = vmatprep.subr.mxu0 0.0
      %240 = vmatpush1.msra.mxu0 0.0
      %241 = vmatprep.subr.mxu0 0.0
      %242 = vmatpush1.msra.mxu0 0.0
      %243 = vmatprep.subr.mxu0 0.0
      %244 = vmatpush1.msra.mxu0 0.0
      %245 = vmatprep.subr.mxu0 0.0
      %246 = vmatpush1.msra.mxu0 0.0
      %247 = vmatprep.subr.mxu0 0.0
      %248 = vmatpush1.msra.mxu0 0.0
      %249 = vmatprep.subr.mxu0 0.0
      %250 = vmatpush1.msra.mxu0 0.0
      %251 = vmatprep.subr.mxu0 0.0
      %252 = vmatpush1.msra.mxu0 0.0
      %253 = vmatprep.subr.mxu0 0.0
      %254 = vmatpush1.msra.mxu0 0.0
      %255 = vmatprep.subr.mxu0 0.0
      %256 = vmatpush1.msra.mxu0 0.0
      %257 = vmatprep.subr.mxu0 0.0
      %258 = vmatpush1.msra.mxu0 0.0
      %259 = vmatprep.subr.mxu0 0.0
      %260 = vmatpush1.msra.mxu0 %v226
      %261 = vmatprep.subr.mxu0 0.0
      %262 = vmatpush1.msra.mxu0 %v225
      %263 = vmatprep.subr.mxu0 0.0
      %264 = vmatpush1.msra.mxu0 %v224
      %265 = vmatprep.subr.mxu0 0.0
      %266 = vmatpush1.msra.mxu0 %v223
      %267 = vmatprep.subr.mxu0 0.0
      %268 = vmatpush2.msra.mxu0 0.0
      %269 = vmatprep.subr.mxu0 0.0
      %270 = vmatpush2.msra.mxu0 0.0
      %271 = vmatprep.subr.mxu0 0.0
      %272 = vmatpush2.msra.mxu0 0.0
      %273 = vmatprep.subr.mxu0 0.0
      %274 = vmatpush2.msra.mxu0 0.0
      %275 = vmatprep.subr.mxu0 0.0
      %276 = vmatpush2.msra.mxu0 0.0
      %277 = vmatprep.subr.mxu0 0.0
      %278 = vmatpush2.msra.mxu0 0.0
      %279 = vmatprep.subr.mxu0 0.0
      %280 = vmatpush2.msra.mxu0 0.0
      %281 = vmatprep.subr.mxu0 0.0
      %282 = vmatpush2.msra.mxu0 0.0
      %283 = vmatprep.subr.mxu0 0.0
      %284 = vmatpush2.msra.mxu0 0.0
      %285 = vmatprep.subr.mxu0 0.0
      %286 = vmatpush2.msra.mxu0 0.0
      %287 = vmatprep.subr.mxu0 0.0
      %288 = vmatpush2.msra.mxu0 0.0
      %289 = vmatprep.subr.mxu0 0.0
      %290 = vmatpush2.msra.mxu0 0.0
      %291 = vmatprep.subr.mxu0 0.0
      %292 = vmatpush2.msra.mxu0 0.0
      %293 = vmatprep.subr.mxu0 0.0
      %294 = vmatpush2.msra.mxu0 0.0
      %295 = vmatprep.subr.mxu0 0.0
      %296 = vmatpush2.msra.mxu0 0.0
      %297 = vmatprep.subr.mxu0 0.0
      %298 = vmatpush2.msra.mxu0 0.0
      %299 = vmatprep.mubr.f32.mxu0 0.0
      %300 = vmatmul.mubr.f32.gmra.mxu0 %v233
      %v301 = vpop.f32.mrf.mxu0
      %v302 = vadd.f32 0.0, %v301
      %v303 = vpop.f32.mrf.mxu0
      %304 = vdwg.mxu0
      %v305 = vadd.f32 %v230, %v302
      %vm306 = vcmask 9216
      %307 = vst.msk [vmem:[#allocation4] sm:$0x3] %vm306, %v305
      %v308 = vld [vmem:[#allocation5] sm:$0x3]
      %v310 = vsel %vm231, %v229, 0
      %312 = vmatprep.subr.mxu0 0.0
      %313 = vmatpush1.msra.mxu0 0.0
      %314 = vmatprep.subr.mxu0 0.0
      %315 = vmatpush1.msra.mxu0 0.0
      %316 = vmatprep.subr.mxu0 0.0
      %317 = vmatpush1.msra.mxu0 0.0
      %318 = vmatprep.subr.mxu0 0.0
      %319 = vmatpush1.msra.mxu0 0.0
      %320 = vmatprep.subr.mxu0 0.0
      %321 = vmatpush1.msra.mxu0 0.0
      %322 = vmatprep.subr.mxu0 0.0
      %323 = vmatpush1.msra.mxu0 0.0
      %324 = vmatprep.subr.mxu0 0.0
      %325 = vmatpush1.msra.mxu0 0.0
      %326 = vmatprep.subr.mxu0 0.0
      %327 = vmatpush1.msra.mxu0 0.0
      %328 = vmatprep.subr.mxu0 0.0
      %329 = vmatpush1.msra.mxu0 0.0
      %330 = vmatprep.subr.mxu0 0.0
      %331 = vmatpush1.msra.mxu0 0.0
      %332 = vmatprep.subr.mxu0 0.0
      %333 = vmatpush1.msra.mxu0 0.0
      %334 = vmatprep.subr.mxu0 0.0
      %335 = vmatpush1.msra.mxu0 0.0
      %336 = vmatprep.subr.mxu0 0.0
      %337 = vmatpush1.msra.mxu0 %v226
      %338 = vmatprep.subr.mxu0 0.0
      %339 = vmatpush1.msra.mxu0 %v225
      %340 = vmatprep.subr.mxu0 0.0
      %341 = vmatpush1.msra.mxu0 %v224
      %342 = vmatprep.subr.mxu0 0.0
      %343 = vmatpush1.msra.mxu0 %v223
      %344 = vmatprep.subr.mxu0 0.0
      %345 = vmatpush2.msra.mxu0 0.0
      %346 = vmatprep.subr.mxu0 0.0
      %347 = vmatpush2.msra.mxu0 0.0
      %348 = vmatprep.subr.mxu0 0.0
      %349 = vmatpush2.msra.mxu0 0.0
      %350 = vmatprep.subr.mxu0 0.0
      %351 = vmatpush2.msra.mxu0 0.0
      %352 = vmatprep.subr.mxu0 0.0
      %353 = vmatpush2.msra.mxu0 0.0
      %354 = vmatprep.subr.mxu0 0.0
      %355 = vmatpush2.msra.mxu0 0.0
      %356 = vmatprep.subr.mxu0 0.0
      %357 = vmatpush2.msra.mxu0 0.0
      %358 = vmatprep.subr.mxu0 0.0
      %359 = vmatpush2.msra.mxu0 0.0
      %360 = vmatprep.subr.mxu0 0.0
      %361 = vmatpush2.msra.mxu0 0.0
      %362 = vmatprep.subr.mxu0 0.0
      %363 = vmatpush2.msra.mxu0 0.0
      %364 = vmatprep.subr.mxu0 0.0
      %365 = vmatpush2.msra.mxu0 0.0
      %366 = vmatprep.subr.mxu0 0.0
      %367 = vmatpush2.msra.mxu0 0.0
      %368 = vmatprep.subr.mxu0 0.0
      %369 = vmatpush2.msra.mxu0 0.0
      %370 = vmatprep.subr.mxu0 0.0
      %371 = vmatpush2.msra.mxu0 0.0
      %372 = vmatprep.subr.mxu0 0.0
      %373 = vmatpush2.msra.mxu0 0.0
      %374 = vmatprep.subr.mxu0 0.0
      %375 = vmatpush2.msra.mxu0 0.0
      %376 = vmatprep.mubr.f32.mxu0 0.0
      %377 = vmatmul.mubr.f32.gmra.mxu0 %v310
      %v378 = vpop.f32.mrf.mxu0
      %v379 = vadd.f32 0.0, %v378
      %v380 = vpop.f32.mrf.mxu0
      %381 = vdwg.mxu0
      %v382 = vadd.f32 %v308, %v379
      %383 = vst.msk [vmem:[#allocation5] sm:$0x3] %vm306, %v382
    $region29: #{tpu_custom_call.1} parent=1 // pred_fallthru
      _
    // Predicated region
    $region30: #{tpu_custom_call.1} parent=1 // pred_check
      _
    $region31: #{tpu_custom_call.1} parent=1 // pred_check_branch
      %385 = sbr.rel (%p31) target = $region33
    $region32: #{tpu_custom_call.1} parent=1 // pred_region
      %v386 = vld [vmem:[%s2] sm:$0x3]
      %v387 = vld [vmem:[#allocation4] sm:$0x3]
      %v388 = vmax.f32 %v387, 0.0
      %v389 = vld [vmem:[#allocation5] sm:$0x3]
      %v390 = vmax.f32 %v389, 0.0
      %v391 = vadd.f32 %v388, %v390
      %vm392 = vcmask 15360
      %v394 = vsel %vm392, %v391, 0
      %vm396 = vcmask 1041408
      %v398 = vsel %vm396, %v386, 0
      %400 = vmatprep.subr.mxu0 0.0
      %401 = vmatpush1.msra.mxu0 0.0
      %402 = vmatprep.subr.mxu0 0.0
      %403 = vmatpush1.msra.mxu0 0.0
      %404 = vmatprep.subr.mxu0 0.0
      %405 = vmatpush1.msra.mxu0 0.0
      %406 = vmatprep.subr.mxu0 0.0
      %407 = vmatpush1.msra.mxu0 0.0
      %408 = vmatprep.subr.mxu0 0.0
      %409 = vmatpush1.msra.mxu0 0.0
      %410 = vmatprep.subr.mxu0 0.0
      %411 = vmatpush1.msra.mxu0 0.0
      %412 = vmatprep.subr.mxu0 0.0
      %413 = vmatpush1.msra.mxu0 0.0
      %414 = vmatprep.subr.mxu0 0.0
      %415 = vmatpush1.msra.mxu0 0.0
      %416 = vmatprep.subr.mxu0 0.0
      %417 = vmatpush1.msra.mxu0 0.0
      %418 = vmatprep.subr.mxu0 0.0
      %419 = vmatpush1.msra.mxu0 0.0
      %420 = vmatprep.subr.mxu0 0.0
      %421 = vmatpush1.msra.mxu0 0.0
      %422 = vmatprep.subr.mxu0 0.0
      %423 = vmatpush1.msra.mxu0 0.0
      %424 = vmatprep.subr.mxu0 0.0
      %425 = vmatpush1.msra.mxu0 0.0
      %426 = vmatprep.subr.mxu0 0.0
      %427 = vmatpush1.msra.mxu0 0.0
      %428 = vmatprep.subr.mxu0 0.0
      %429 = vmatpush1.msra.mxu0 0.0
      %430 = vmatprep.subr.mxu0 0.0
      %431 = vmatpush1.msra.mxu0 %v398
      %432 = vmatprep.subr.mxu0 0.0
      %433 = vmatpush2.msra.mxu0 0.0
      %434 = vmatprep.subr.mxu0 0.0
      %435 = vmatpush2.msra.mxu0 0.0
      %436 = vmatprep.subr.mxu0 0.0
      %437 = vmatpush2.msra.mxu0 0.0
      %438 = vmatprep.subr.mxu0 0.0
      %439 = vmatpush2.msra.mxu0 0.0
      %440 = vmatprep.subr.mxu0 0.0
      %441 = vmatpush2.msra.mxu0 0.0
      %442 = vmatprep.subr.mxu0 0.0
      %443 = vmatpush2.msra.mxu0 0.0
      %444 = vmatprep.subr.mxu0 0.0
      %445 = vmatpush2.msra.mxu0 0.0
      %446 = vmatprep.subr.mxu0 0.0
      %447 = vmatpush2.msra.mxu0 0.0
      %448 = vmatprep.subr.mxu0 0.0
      %449 = vmatpush2.msra.mxu0 0.0
      %450 = vmatprep.subr.mxu0 0.0
      %451 = vmatpush2.msra.mxu0 0.0
      %452 = vmatprep.subr.mxu0 0.0
      %453 = vmatpush2.msra.mxu0 0.0
      %454 = vmatprep.subr.mxu0 0.0
      %455 = vmatpush2.msra.mxu0 0.0
      %456 = vmatprep.subr.mxu0 0.0
      %457 = vmatpush2.msra.mxu0 0.0
      %458 = vmatprep.subr.mxu0 0.0
      %459 = vmatpush2.msra.mxu0 0.0
      %460 = vmatprep.subr.mxu0 0.0
      %461 = vmatpush2.msra.mxu0 0.0
      %462 = vmatprep.subr.mxu0 0.0
      %463 = vmatpush2.msra.mxu0 0.0
      %464 = vmatprep.mubr.f32.mxu0 0.0
      %465 = vmatmul.mubr.f32.gmra.mxu0 %v394
      %v466 = vpop.f32.mrf.mxu0
      %v467 = vadd.f32 0.0, %v466
      %v468 = vpop.f32.mrf.mxu0
      %469 = vdwg.mxu0
      %v470 = vxor.u32 %v467, 2147483648
      %v471 = vmul.f32 %v470, 1.442695
      %v472 = vpow.pop %v471
      %v473 = vadd.f32 %v472, 1.0
      %v474 = vrcp.pop %v473
      %v475 = vmul.f32 1.0, %v474
      %476 = vst.msk [vmem:[#allocation9] sm:$0x3] %vm143, %v475
    $region33: #{tpu_custom_call.1} parent=1 // pred_fallthru
      _
    // Predicated region
    $region34: #{tpu_custom_call.1} parent=1 // pred_check
      _
    $region35: #{tpu_custom_call.1} parent=1 // pred_check_branch
      %478 = sbr.rel (0) target = $region37
    $region36: #{tpu_custom_call.1} parent=1 // pred_region
      %s480 = ssub.s32 32, 32
      %481 = vsyncadd [#allocation8], %s480
      %s483 = sshll.u32 [#allocation9], 4
      %s484 = int_to_ptr.vmem [resolvable:$true] %s483
      %486 = dma.vmem_to_hbm [thread:$0]  %s484, 32, %s3, [#allocation8]
    $region37: #{tpu_custom_call.1} parent=1 // pred_fallthru
      _
    // Predicated region
    $region38: #{tpu_custom_call.1} parent=1 // pred_check
      _
    $region39: #{tpu_custom_call.1} parent=1 // pred_check_branch
      %488 = sbr.rel (0) target = $region41
    $region40: #{tpu_custom_call.1} parent=1 // pred_region
      %489 = dma.done [#allocation8], 32
    $region41: #{tpu_custom_call.1} parent=1 // pred_fallthru
      _
    %490 = vsyncpa [#allocation7], 1
    %491 = vsyncpa [#allocation8], 1

</llo_original>
